<compile_context>
chip_gen: v6e
topology: v6e:2x2x1
jax: 0.10.0
libtpu: 0.0.40
codegen_flags: <defaults>
</compile_context>

<pallas_src>
import functools

import jax
import jax.numpy as jnp
from jax.experimental import pallas as pl
from jax.experimental.pallas import tpu as pltpu


def conv_block1d_kernel(x_ref, wdw_ref, wpw_ref, shift_ref, o_ref, *, padding):
    # x_ref:     (nb, C_in, L)        input batch block (any float dtype)
    # wdw_ref:   (K, C_in, 1)         depthwise taps (groups=C_in), f32
    # wpw_ref:   (C_out, C_in)        pointwise weights with BN scale folded in
    # shift_ref: (C_out, 1)           folded BN shift = beta - mean*scale
    # o_ref:     (nb, C_out, L_out)
    nb, c_in, length = x_ref.shape
    _, c_out, out_len = o_ref.shape
    k_size = wdw_ref.shape[0]

    x = x_ref[...].astype(jnp.float32)                       # (nb, C_in, L)

    # Zero-padded halo built as a value: no scratch ref, no extra VMEM pass.
    if padding > 0:
        zpad = jnp.zeros((nb, c_in, padding), jnp.float32)
        xp = jnp.concatenate([zpad, x, zpad], axis=2)        # (nb, C_in, L+2p)
    else:
        xp = x

    wdw = wdw_ref[...]                                       # (K, C_in, 1)
    wpw = wpw_ref[...]                                       # (C_out, C_in)
    shift = shift_ref[...].reshape(1, c_out, 1)              # (1, C_out, 1)

    # Depthwise conv: K shifted-tap FMAs over the whole batch block.
    # wdw[k] is (C_in, 1) -> broadcasts over (nb, C_in, out_len) for free.
    y = wdw[0] * xp[:, :, 0:out_len]
    for k in range(1, k_size):                               # K is small & static
        y = y + wdw[k] * xp[:, :, k:k + out_len]             # (nb, C_in, out_len)

    # Pointwise 1x1 conv (+ folded BN scale): one batched MXU matmul per step.
    # (For tiny C_in the MXU is under-filled, but the kernel is HBM-bound so
    #  the matmul is off the critical path; a VPU unroll over C_in only pays
    #  for very short blocks.)
    wpw_b = jnp.broadcast_to(wpw, (nb, c_out, c_in))
    z = jnp.einsum("boc,bcl->bol", wpw_b, y,
                   preferred_element_type=jnp.float32)       # (nb, C_out, L_out)

    # BN shift + ReLU; Dropout(p=0.5) is identity in eval mode.
    o_ref[...] = jnp.maximum(z + shift, 0.0).astype(o_ref.dtype)


def _num_tensorcores():
    """Best-effort TensorCore count of the local chip (megacore/v7x have 2)."""
    try:
        kind = jax.devices()[0].device_kind.lower()
    except Exception:
        return 1
    return 2 if any(t in kind for t in ("v4", "v5p", "v7", "7x")) else 1


def _pick_batch_block(n, c_in, c_out, length, padding, out_len, itemsize,
                      num_cores):
    """Batch elements per grid step.

    Sized so the real per-step VMEM footprint (double-buffered input/output
    blocks + f32 intermediates) stays well inside the explicit 32 MiB VMEM
    limit, with a tighter cap on multi-TC chips (v7x has 64 MiB physical VMEM
    per core) where the grid is also kept >= num_cores balanced steps so every
    TensorCore gets work.  Single-TC chips (v5e/v6e) may take nb == n.
    Non-divisor nb is fine: the wrapper uses grid = cdiv(n, nb).
    """
    budget = (8 << 20) if num_cores > 1 else (16 << 20)
    pad_len = length + 2 * padding
    per_batch = (
        2 * (c_in * length + c_out * out_len) * itemsize       # streamed blocks, double-buffered
        + (c_in * pad_len + (c_in + c_out) * out_len) * 4)     # f32 intermediates (xp, y, z)
    nb = max(1, min(n, budget // max(per_batch, 1)))
    if num_cores > 1 and n > 1:
        nb = min(nb, pl.cdiv(n, num_cores))                    # >= num_cores grid steps
    return int(nb)


@functools.partial(jax.jit, static_argnames=("padding",))
def conv_block1d(x, w_dw, w_pw, gamma, beta, running_mean, running_var,
                 *, padding, eps=1e-3):
    """x: (N, C_in, L) NCL (like PyTorch Conv1d). Returns (N, C_out, L_out)."""
    n, c_in, length = x.shape
    c_out = w_pw.shape[0]
    k_size = w_dw.shape[2]
    out_len = length + 2 * padding - k_size + 1

    # Fold BatchNorm (eval mode, running stats, eps=0.001 per the module spec)
    # into the pointwise weights; keep only the shift as an in-kernel bias.
    scale = gamma.astype(jnp.float32) * jax.lax.rsqrt(
        running_var.astype(jnp.float32) + eps)                          # (C_out,)
    wpw_scaled = w_pw[:, :, 0].astype(jnp.float32) * scale[:, None]      # (C_out, C_in)
    shift = (beta.astype(jnp.float32)
             - running_mean.astype(jnp.float32) * scale).reshape(c_out, 1)
    # Depthwise taps laid out (K, C_in, 1): each tap broadcasts for free.
    wdw_k = jnp.transpose(w_dw[:, 0, :].astype(jnp.float32)).reshape(
        k_size, c_in, 1)

    num_cores = _num_tensorcores()
    nb = _pick_batch_block(n, c_in, c_out, length, padding, out_len,
                           jnp.dtype(x.dtype).itemsize, num_cores)
    grid_steps = int(pl.cdiv(n, nb))

    grid_spec = pltpu.PrefetchScalarGridSpec(
        num_scalar_prefetch=0,
        grid=(grid_steps,),
        in_specs=[
            pl.BlockSpec((nb, c_in, length), lambda i: (i, 0, 0)),
            pl.BlockSpec((k_size, c_in, 1), lambda i: (0, 0, 0)),
            pl.BlockSpec((c_out, c_in), lambda i: (0, 0)),
            pl.BlockSpec((c_out, 1), lambda i: (0, 0)),
        ],
        out_specs=pl.BlockSpec((nb, c_out, out_len), lambda i: (i, 0, 0)),
    )

    kernel = functools.partial(conv_block1d_kernel, padding=padding)
    return pl.pallas_call(
        kernel,
        out_shape=jax.ShapeDtypeStruct((n, c_out, out_len), x.dtype),
        grid_spec=grid_spec,
        compiler_params=pltpu.CompilerParams(
            dimension_semantics=("parallel",),
            vmem_limit_bytes=32 * 1024 * 1024),
    )(x, wdw_k, wpw_scaled, shift)


def conv_block1d_ref(x, w_dw, w_pw, gamma, beta, running_mean, running_var,
                     *, padding, eps=1e-3):
    """Pure-JAX reference (eval-mode) for correctness checking."""
    n, c_in, length = x.shape
    c_out = w_pw.shape[0]
    k_size = w_dw.shape[2]
    out_len = length + 2 * padding - k_size + 1
    x_pad = jnp.pad(x, ((0, 0), (0, 0), (padding, padding)))
    # depthwise
    y = jnp.zeros((n, c_in, out_len), jnp.float32)
    for k in range(k_size):
        y = y + w_dw[None, :, 0, k, None] * x_pad[:, :, k:k + out_len]
    # pointwise
    z = jnp.einsum("oc,ncl->nol", w_pw[:, :, 0], y)
    # BN (running stats) + ReLU
    z = (z - running_mean[None, :, None]) / jnp.sqrt(running_var[None, :, None] + eps)
    z = z * gamma[None, :, None] + beta[None, :, None]
    return jnp.maximum(z, 0.0)


if __name__ == "__main__":
    # Small shapes consistent with the module: Conv1d over (N, C_in, L).
    N, C_IN, C_OUT, L = 2, 4, 8, 16
    K, PAD = 3, 1

    key = jax.random.PRNGKey(0)
    k1, k2, k3, k4, k5 = jax.random.split(key, 5)

    x = jax.random.normal(k1, (N, C_IN, L), dtype=jnp.float32)
    w_dw = jax.random.normal(k2, (C_IN, 1, K), dtype=jnp.float32) * 0.3      # depthwise weight
    w_pw = jax.random.normal(k3, (C_OUT, C_IN, 1), dtype=jnp.float32) * 0.3  # pointwise weight
    gamma = 1.0 + 0.1 * jax.random.normal(k4, (C_OUT,), dtype=jnp.float32)
    beta = 0.1 * jax.random.normal(k5, (C_OUT,), dtype=jnp.float32)
    running_mean = jnp.zeros((C_OUT,), jnp.float32)   # BN init values
    running_var = jnp.ones((C_OUT,), jnp.float32)

    out = conv_block1d(x, w_dw, w_pw, gamma, beta, running_mean, running_var,
                       padding=PAD)
    out = jax.block_until_ready(out)

    ref = conv_block1d_ref(x, w_dw, w_pw, gamma, beta, running_mean, running_var,
                           padding=PAD)
    assert out.shape == (N, C_OUT, L), out.shape
    assert jnp.allclose(out, ref, atol=1e-5, rtol=1e-5), "mismatch vs reference"

    print("KERNEL_OK")
</pallas_src>

<mosaic_0001>
module attributes {stable_mosaic.version = 11 : i64} {
  func.func @conv_block1d_kernel(%arg0: i32, %arg1: memref<2x4x16xf32, #tpu.memory_space<vmem>>, %arg2: memref<3x4x1xf32, #tpu.memory_space<vmem>>, %arg3: memref<8x4xf32, #tpu.memory_space<vmem>>, %arg4: memref<8x1xf32, #tpu.memory_space<vmem>>, %arg5: memref<2x8x16xf32, #tpu.memory_space<vmem>>) attributes {dimension_semantics = [#tpu.dimension_semantics<parallel>], iteration_bounds = array<i64: 1>, scalar_prefetch = 0 : i64, scratch_operands = 0 : i64, tpu.core_type = #tpu.core_type<tc>, window_params = [{transform_indices = @transform_0, window_bounds = array<i64: 2, 4, 16>}, {pipeline_mode = #tpu.pipeline_mode<synchronous>, transform_indices = @transform_1, window_bounds = array<i64: 3, 4, 1>}, {pipeline_mode = #tpu.pipeline_mode<synchronous>, transform_indices = @transform_2, window_bounds = array<i64: 8, 4>}, {pipeline_mode = #tpu.pipeline_mode<synchronous>, transform_indices = @transform_3, window_bounds = array<i64: 8, 1>}, {transform_indices = @transform_4, window_bounds = array<i64: 2, 8, 16>}]} {
    %c0 = arith.constant 0 : index
    %c0_0 = arith.constant 0 : index
    %c0_1 = arith.constant 0 : index
    %0 = vector.load %arg1[%c0, %c0_0, %c0_1] : memref<2x4x16xf32, #tpu.memory_space<vmem>>, vector<2x4x16xf32>
    %cst = arith.constant 0.000000e+00 : f32
    %1 = vector.broadcast %cst : f32 to vector<2x4x1xf32>
    %2 = tpu.concatenate %1, %0, %1 in 2 : vector<2x4x1xf32>, vector<2x4x16xf32>, vector<2x4x1xf32> -> vector<2x4x18xf32>
    %c0_2 = arith.constant 0 : index
    %c0_3 = arith.constant 0 : index
    %c0_4 = arith.constant 0 : index
    %3 = vector.load %arg2[%c0_2, %c0_3, %c0_4] : memref<3x4x1xf32, #tpu.memory_space<vmem>>, vector<3x4x1xf32>
    %c0_5 = arith.constant 0 : index
    %c0_6 = arith.constant 0 : index
    %4 = vector.load %arg3[%c0_5, %c0_6] : memref<8x4xf32, #tpu.memory_space<vmem>>, vector<8x4xf32>
    %c0_7 = arith.constant 0 : index
    %c0_8 = arith.constant 0 : index
    %5 = vector.load %arg4[%c0_7, %c0_8] : memref<8x1xf32, #tpu.memory_space<vmem>>, vector<8x1xf32>
    %6 = vector.shape_cast %5 : vector<8x1xf32> to vector<1x8x1xf32>
    %7 = vector.extract_strided_slice %3 {offsets = [0, 0, 0], sizes = [1, 4, 1], strides = [1, 1, 1]} : vector<3x4x1xf32> to vector<1x4x1xf32>
    %8 = vector.shape_cast %7 : vector<1x4x1xf32> to vector<4x1xf32>
    %9 = vector.extract_strided_slice %2 {offsets = [0, 0, 0], sizes = [2, 4, 16], strides = [1, 1, 1]} : vector<2x4x18xf32> to vector<2x4x16xf32>
    %10 = vector.shape_cast %8 : vector<4x1xf32> to vector<1x4x1xf32>
    %11 = vector.broadcast %10 : vector<1x4x1xf32> to vector<2x4x16xf32>
    %12 = arith.mulf %11, %9 : vector<2x4x16xf32>
    %13 = vector.extract_strided_slice %3 {offsets = [1, 0, 0], sizes = [1, 4, 1], strides = [1, 1, 1]} : vector<3x4x1xf32> to vector<1x4x1xf32>
    %14 = vector.shape_cast %13 : vector<1x4x1xf32> to vector<4x1xf32>
    %15 = vector.extract_strided_slice %2 {offsets = [0, 0, 1], sizes = [2, 4, 16], strides = [1, 1, 1]} : vector<2x4x18xf32> to vector<2x4x16xf32>
    %16 = vector.shape_cast %14 : vector<4x1xf32> to vector<1x4x1xf32>
    %17 = vector.broadcast %16 : vector<1x4x1xf32> to vector<2x4x16xf32>
    %18 = arith.mulf %17, %15 : vector<2x4x16xf32>
    %19 = arith.addf %12, %18 : vector<2x4x16xf32>
    %20 = vector.extract_strided_slice %3 {offsets = [2, 0, 0], sizes = [1, 4, 1], strides = [1, 1, 1]} : vector<3x4x1xf32> to vector<1x4x1xf32>
    %21 = vector.shape_cast %20 : vector<1x4x1xf32> to vector<4x1xf32>
    %22 = vector.extract_strided_slice %2 {offsets = [0, 0, 2], sizes = [2, 4, 16], strides = [1, 1, 1]} : vector<2x4x18xf32> to vector<2x4x16xf32>
    %23 = vector.shape_cast %21 : vector<4x1xf32> to vector<1x4x1xf32>
    %24 = vector.broadcast %23 : vector<1x4x1xf32> to vector<2x4x16xf32>
    %25 = arith.mulf %24, %22 : vector<2x4x16xf32>
    %26 = arith.addf %19, %25 : vector<2x4x16xf32>
    %27 = vector.shape_cast %4 : vector<8x4xf32> to vector<1x8x4xf32>
    %28 = vector.broadcast %27 : vector<1x8x4xf32> to vector<2x8x4xf32>
    "tpu.trace_start"() <{level = 10 : i32, message = "boc,bcl->bol"}> : () -> ()
    %cst_9 = arith.constant dense<0.000000e+00> : vector<2x8x16xf32>
    %29 = tpu.matmul %28, %26, %cst_9 {dimension_numbers = #tpu.dot_dimension_numbers<[2], [1], [1], [2], [0, 0, 0, 1, 1, 2], [0], [0]>} : vector<2x8x4xf32>, vector<2x4x16xf32>, vector<2x8x16xf32> -> vector<2x8x16xf32>
    "tpu.trace_stop"() : () -> ()
    %30 = vector.broadcast %6 : vector<1x8x1xf32> to vector<2x8x16xf32>
    %31 = arith.addf %29, %30 : vector<2x8x16xf32>
    %cst_10 = arith.constant 0.000000e+00 : f32
    %32 = vector.broadcast %cst_10 : f32 to vector<2x8x16xf32>
    %33 = arith.maximumf %31, %32 : vector<2x8x16xf32>
    %c0_11 = arith.constant 0 : index
    %c0_12 = arith.constant 0 : index
    %c0_13 = arith.constant 0 : index
    %34 = vector.load %arg5[%c0_11, %c0_12, %c0_13] : memref<2x8x16xf32, #tpu.memory_space<vmem>>, vector<2x8x16xf32>
    tpu.vector_store %arg5[%c0_11, %c0_12, %c0_13], %33 {strides = array<i32>} : memref<2x8x16xf32, #tpu.memory_space<vmem>>, vector<2x8x16xf32>,
    return
  }
  func.func @transform_0(%arg0: i32) -> (i32, i32, i32) {
    %c0_i32 = arith.constant 0 : i32
    %c0_i32_0 = arith.constant 0 : i32
    %c0_i32_1 = arith.constant 0 : i32
    return %arg0, %c0_i32, %c0_i32_0 : i32, i32, i32
  }
  func.func @transform_1(%arg0: i32) -> (i32, i32, i32) {
    %c0_i32 = arith.constant 0 : i32
    %c0_i32_0 = arith.constant 0 : i32
    %c0_i32_1 = arith.constant 0 : i32
    %c0_i32_2 = arith.constant 0 : i32
    return %c0_i32, %c0_i32_0, %c0_i32_1 : i32, i32, i32
  }
  func.func @transform_2(%arg0: i32) -> (i32, i32) {
    %c0_i32 = arith.constant 0 : i32
    %c0_i32_0 = arith.constant 0 : i32
    %c0_i32_1 = arith.constant 0 : i32
    return %c0_i32, %c0_i32_0 : i32, i32
  }
  func.func @transform_3(%arg0: i32) -> (i32, i32) {
    %c0_i32 = arith.constant 0 : i32
    %c0_i32_0 = arith.constant 0 : i32
    %c0_i32_1 = arith.constant 0 : i32
    return %c0_i32, %c0_i32_0 : i32, i32
  }
  func.func @transform_4(%arg0: i32) -> (i32, i32, i32) {
    %c0_i32 = arith.constant 0 : i32
    %c0_i32_0 = arith.constant 0 : i32
    %c0_i32_1 = arith.constant 0 : i32
    return %arg0, %c0_i32, %c0_i32_0 : i32, i32, i32
  }
}

</mosaic_0001>

<llo_original>
// kernel: conv_block1d.1
$region0: #{conv_block1d.1}
  #allocation0 [shape = 'u32[]', space=smem, size = 0x4, offset = 0x4, fixed_abs, tag = 'smem constant byte address 0x4 - core index']
  #allocation1 [shape = 'u32[144,128]{1,0:T(1,128)}', space=vmem, size = 0x12000, scoped, tag = 'internal scratch']
  %s0 = inlined_call_operand.vmem [shape: f32[2,4,16], index: 0, kind: input, shape index: {}]
  %s1 = inlined_call_operand.vmem [shape: f32[3,4,1], index: 1, kind: input, shape index: {}]
  %s2 = inlined_call_operand.vmem [shape: f32[8,4], index: 2, kind: input, shape index: {}]
  %s3 = inlined_call_operand.vmem [shape: f32[8,1], index: 3, kind: input, shape index: {}]
  %s4 = inlined_call_operand.hbm [shape: f32[2,8,16], index: 4, kind: output, shape index: {}]
  %s5 = sld [smem:[#allocation0]]
  $region26: #{conv_block1d.1} parent=0
    _
  %s7 = ssub.s32 1, %s5
  %s8 = scalar_select 0, %s7, %s5
  $region1: #{conv_block1d.1} parent=0
    #allocation2 [shape = 'u8[8192]{0}', space=vmem, size = 0x2000, scoped, tag = 'output window, operand 0, single buffered']
    #allocation3 [shape = 's32[1]{0}', space=sflag, size = 0x4, scoped, tag = 'scoped memory for conv_block1d.1']
    %9 = vsyncpa [#allocation3], 0
    // Predicated region
    $region2: #{conv_block1d.1} parent=1 // pred_check
      _
    $region3: #{conv_block1d.1} parent=1 // pred_check_branch
      %11 = sbr.rel (0) target = $region5
    $region4: #{conv_block1d.1} parent=1 // pred_region
      _
    $region5: #{conv_block1d.1} parent=1 // pred_fallthru
      _
    // Predicated region
    $region6: #{conv_block1d.1} parent=1 // pred_check
      _
    $region7: #{conv_block1d.1} parent=1 // pred_check_branch
      %13 = sbr.rel (0) target = $region9
    $region8: #{conv_block1d.1} parent=1 // pred_region
      _
    $region9: #{conv_block1d.1} parent=1 // pred_fallthru
      _
    // Predicated region
    $region10: #{conv_block1d.1} parent=1 // pred_check
      _
    $region11: #{conv_block1d.1} parent=1 // pred_check_branch
      %15 = sbr.rel (0) target = $region13
    $region12: #{conv_block1d.1} parent=1 // pred_region
      _
    $region13: #{conv_block1d.1} parent=1 // pred_fallthru
      _
    // Predicated region
    $region14: #{conv_block1d.1} parent=1 // pred_check
      _
    $region15: #{conv_block1d.1} parent=1 // pred_check_branch
      %17 = sbr.rel (0) target = $region17
    $region16: #{conv_block1d.1} parent=1 // pred_region
      _
    $region17: #{conv_block1d.1} parent=1 // pred_fallthru
      _
    %v18 = vld [vmem:[%s0] sm:$0xf]
    %v19 = vld [vmem:[%s0 + $0x4] sm:$0xf]
    %22 = vrot.lane.b32.xlu0 %v18, 1
    %v23 = vpop.permute.xlu0 %22
    %24 = vrot.lane.b32.xlu0 %v19, 1
    %v25 = vpop.permute.xlu0 %24
    %vm28 = vcmask 7168
    %v29 = vsel %vm28, 0.0, %v23
    %v30 = vsel %vm28, 0.0, %v25
    %vm31 = vcmask 138240
    %v32 = vsel %vm31, %v29, 0.0
    %v33 = vsel %vm31, %v30, 0.0
    %v34 = vld [vmem:[%s1] sm:$0xf]
    %v35 = vld [vmem:[%s1 + $0x4] sm:$0xf]
    %v36 = vld [vmem:[%s1 + $0x8] sm:$0xf]
    %v37 = vld [vmem:[%s2] sm:$0xff]
    %v38 = vld [vmem:[%s3] sm:$0xff]
    %40 = vset.pattern.permute.xlu0 0
    %41 = vperm.xlu0 %40, %v34
    %v42 = vpop.permute.xlu0 %41
    %v44 = vmul.f32 %v42, %v32
    %v45 = vmul.f32 %v42, %v33
    %47 = vset.pattern.permute.xlu0 0
    %48 = vperm.xlu0 %47, %v35
    %v49 = vpop.permute.xlu0 %48
    %v51 = vmul.f32 %v49, %v32
    %v52 = vmul.f32 %v49, %v33
    %55 = vrot.lane.b32.xlu0 %v51, 127
    %v56 = vpop.permute.xlu0 %55
    %57 = vrot.lane.b32.xlu0 %v52, 127
    %v58 = vpop.permute.xlu0 %57
    %v61 = vadd.f32 %v44, %v56
    %v62 = vadd.f32 %v45, %v58
    %64 = vset.pattern.permute.xlu0 0
    %65 = vperm.xlu0 %64, %v36
    %v66 = vpop.permute.xlu0 %65
    %v68 = vmul.f32 %v66, %v32
    %v69 = vmul.f32 %v66, %v33
    %72 = vrot.lane.b32.xlu0 %v68, 126
    %v73 = vpop.permute.xlu0 %72
    %74 = vrot.lane.b32.xlu0 %v69, 126
    %v75 = vpop.permute.xlu0 %74
    %v78 = vadd.f32 %v61, %v73
    %v79 = vadd.f32 %v62, %v75
    %81 = vset.pattern.permute.xlu0 0
    %82 = vperm.xlu0 %81, %v38
    %v83 = vpop.permute.xlu0 %82
    %vm85 = vcmask 31744
    %v87 = vsel %vm85, %v37, 0
    %vm89 = vcmask 1043456
    %v91 = vsel %vm89, %v78, 0
    %93 = vmatprep.subr.mxu0 0.0
    %94 = vmatpush1.msra.mxu0 0.0
    %95 = vmatprep.subr.mxu0 0.0
    %96 = vmatpush1.msra.mxu0 0.0
    %97 = vmatprep.subr.mxu0 0.0
    %98 = vmatpush1.msra.mxu0 0.0
    %99 = vmatprep.subr.mxu0 0.0
    %100 = vmatpush1.msra.mxu0 0.0
    %101 = vmatprep.subr.mxu0 0.0
    %102 = vmatpush1.msra.mxu0 0.0
    %103 = vmatprep.subr.mxu0 0.0
    %104 = vmatpush1.msra.mxu0 0.0
    %105 = vmatprep.subr.mxu0 0.0
    %106 = vmatpush1.msra.mxu0 0.0
    %107 = vmatprep.subr.mxu0 0.0
    %108 = vmatpush1.msra.mxu0 0.0
    %109 = vmatprep.subr.mxu0 0.0
    %110 = vmatpush1.msra.mxu0 0.0
    %111 = vmatprep.subr.mxu0 0.0
    %112 = vmatpush1.msra.mxu0 0.0
    %113 = vmatprep.subr.mxu0 0.0
    %114 = vmatpush1.msra.mxu0 0.0
    %115 = vmatprep.subr.mxu0 0.0
    %116 = vmatpush1.msra.mxu0 0.0
    %117 = vmatprep.subr.mxu0 0.0
    %118 = vmatpush1.msra.mxu0 0.0
    %119 = vmatprep.subr.mxu0 0.0
    %120 = vmatpush1.msra.mxu0 0.0
    %121 = vmatprep.subr.mxu0 0.0
    %122 = vmatpush1.msra.mxu0 0.0
    %123 = vmatprep.subr.mxu0 0.0
    %124 = vmatpush1.msra.mxu0 %v91
    %125 = vmatprep.subr.mxu0 0.0
    %126 = vmatpush2.msra.mxu0 0.0
    %127 = vmatprep.subr.mxu0 0.0
    %128 = vmatpush2.msra.mxu0 0.0
    %129 = vmatprep.subr.mxu0 0.0
    %130 = vmatpush2.msra.mxu0 0.0
    %131 = vmatprep.subr.mxu0 0.0
    %132 = vmatpush2.msra.mxu0 0.0
    %133 = vmatprep.subr.mxu0 0.0
    %134 = vmatpush2.msra.mxu0 0.0
    %135 = vmatprep.subr.mxu0 0.0
    %136 = vmatpush2.msra.mxu0 0.0
    %137 = vmatprep.subr.mxu0 0.0
    %138 = vmatpush2.msra.mxu0 0.0
    %139 = vmatprep.subr.mxu0 0.0
    %140 = vmatpush2.msra.mxu0 0.0
    %141 = vmatprep.subr.mxu0 0.0
    %142 = vmatpush2.msra.mxu0 0.0
    %143 = vmatprep.subr.mxu0 0.0
    %144 = vmatpush2.msra.mxu0 0.0
    %145 = vmatprep.subr.mxu0 0.0
    %146 = vmatpush2.msra.mxu0 0.0
    %147 = vmatprep.subr.mxu0 0.0
    %148 = vmatpush2.msra.mxu0 0.0
    %149 = vmatprep.subr.mxu0 0.0
    %150 = vmatpush2.msra.mxu0 0.0
    %151 = vmatprep.subr.mxu0 0.0
    %152 = vmatpush2.msra.mxu0 0.0
    %153 = vmatprep.subr.mxu0 0.0
    %154 = vmatpush2.msra.mxu0 0.0
    %155 = vmatprep.subr.mxu0 0.0
    %156 = vmatpush2.msra.mxu0 0.0
    %157 = vmatprep.mubr.f32.mxu0 0.0
    %158 = vmatmul.mubr.f32.gmra.mxu0 %v87
    %v159 = vpop.f32.mrf.mxu0
    %v160 = vadd.f32 %v83, %v159
    %v161 = vpop.f32.mrf.mxu0
    %162 = vdwg.mxu0
    %v164 = vsel %vm89, %v79, 0
    %166 = vmatprep.subr.mxu0 0.0
    %167 = vmatpush1.msra.mxu0 0.0
    %168 = vmatprep.subr.mxu0 0.0
    %169 = vmatpush1.msra.mxu0 0.0
    %170 = vmatprep.subr.mxu0 0.0
    %171 = vmatpush1.msra.mxu0 0.0
    %172 = vmatprep.subr.mxu0 0.0
    %173 = vmatpush1.msra.mxu0 0.0
    %174 = vmatprep.subr.mxu0 0.0
    %175 = vmatpush1.msra.mxu0 0.0
    %176 = vmatprep.subr.mxu0 0.0
    %177 = vmatpush1.msra.mxu0 0.0
    %178 = vmatprep.subr.mxu0 0.0
    %179 = vmatpush1.msra.mxu0 0.0
    %180 = vmatprep.subr.mxu0 0.0
    %181 = vmatpush1.msra.mxu0 0.0
    %182 = vmatprep.subr.mxu0 0.0
    %183 = vmatpush1.msra.mxu0 0.0
    %184 = vmatprep.subr.mxu0 0.0
    %185 = vmatpush1.msra.mxu0 0.0
    %186 = vmatprep.subr.mxu0 0.0
    %187 = vmatpush1.msra.mxu0 0.0
    %188 = vmatprep.subr.mxu0 0.0
    %189 = vmatpush1.msra.mxu0 0.0
    %190 = vmatprep.subr.mxu0 0.0
    %191 = vmatpush1.msra.mxu0 0.0
    %192 = vmatprep.subr.mxu0 0.0
    %193 = vmatpush1.msra.mxu0 0.0
    %194 = vmatprep.subr.mxu0 0.0
    %195 = vmatpush1.msra.mxu0 0.0
    %196 = vmatprep.subr.mxu0 0.0
    %197 = vmatpush1.msra.mxu0 %v164
    %198 = vmatprep.subr.mxu0 0.0
    %199 = vmatpush2.msra.mxu0 0.0
    %200 = vmatprep.subr.mxu0 0.0
    %201 = vmatpush2.msra.mxu0 0.0
    %202 = vmatprep.subr.mxu0 0.0
    %203 = vmatpush2.msra.mxu0 0.0
    %204 = vmatprep.subr.mxu0 0.0
    %205 = vmatpush2.msra.mxu0 0.0
    %206 = vmatprep.subr.mxu0 0.0
    %207 = vmatpush2.msra.mxu0 0.0
    %208 = vmatprep.subr.mxu0 0.0
    %209 = vmatpush2.msra.mxu0 0.0
    %210 = vmatprep.subr.mxu0 0.0
    %211 = vmatpush2.msra.mxu0 0.0
    %212 = vmatprep.subr.mxu0 0.0
    %213 = vmatpush2.msra.mxu0 0.0
    %214 = vmatprep.subr.mxu0 0.0
    %215 = vmatpush2.msra.mxu0 0.0
    %216 = vmatprep.subr.mxu0 0.0
    %217 = vmatpush2.msra.mxu0 0.0
    %218 = vmatprep.subr.mxu0 0.0
    %219 = vmatpush2.msra.mxu0 0.0
    %220 = vmatprep.subr.mxu0 0.0
    %221 = vmatpush2.msra.mxu0 0.0
    %222 = vmatprep.subr.mxu0 0.0
    %223 = vmatpush2.msra.mxu0 0.0
    %224 = vmatprep.subr.mxu0 0.0
    %225 = vmatpush2.msra.mxu0 0.0
    %226 = vmatprep.subr.mxu0 0.0
    %227 = vmatpush2.msra.mxu0 0.0
    %228 = vmatprep.subr.mxu0 0.0
    %229 = vmatpush2.msra.mxu0 0.0
    %230 = vmatprep.mubr.f32.mxu0 0.0
    %231 = vmatmul.mubr.f32.gmra.mxu0 %v87
    %v232 = vpop.f32.mrf.mxu0
    %v233 = vadd.f32 %v83, %v232
    %v234 = vpop.f32.mrf.mxu0
    %235 = vdwg.mxu0
    %v236 = vmax.f32 %v160, 0.0
    %v237 = vmax.f32 %v233, 0.0
    %vm238 = vcmask 130048
    %239 = vst.msk [vmem:[#allocation2] sm:$0xff] %vm238, %v236
    %240 = vst.msk [vmem:[#allocation2 + $0x8] sm:$0xff] %vm238, %v237
    // Predicated region
    $region18: #{conv_block1d.1} parent=1 // pred_check
      _
    $region19: #{conv_block1d.1} parent=1 // pred_check_branch
      %242 = sbr.rel (0) target = $region21
    $region20: #{conv_block1d.1} parent=1 // pred_region
      %s244 = ssub.s32 256, 256
      %245 = vsyncadd [#allocation3], %s244
      %s246 = sshll.u32 [#allocation2], 4
      %s247 = int_to_ptr.vmem [resolvable:$true] %s246
      %252 = dma.vmem_to_hbm [thread:$0]  %s247, 256, %s4, [#allocation3], 128, 128, 8
    $region21: #{conv_block1d.1} parent=1 // pred_fallthru
      _
    // Predicated region
    $region22: #{conv_block1d.1} parent=1 // pred_check
      _
    $region23: #{conv_block1d.1} parent=1 // pred_check_branch
      %254 = sbr.rel (0) target = $region25
    $region24: #{conv_block1d.1} parent=1 // pred_region
      %255 = dma.done [#allocation3], 256
    $region25: #{conv_block1d.1} parent=1 // pred_fallthru
      _
    %256 = vsyncpa [#allocation3], 1

</llo_original>
